<compile_context>
chip_gen: v6e
topology: v6e:2x2x1
jax: 0.10.0
libtpu: 0.0.40
codegen_flags: <defaults>
</compile_context>

<pallas_src>
import functools

import numpy as np
import jax
import jax.numpy as jnp
from jax.experimental import pallas as pl
from jax.experimental.pallas import tpu as pltpu

_EPS = 1e-7
_TEMP = 0.1
WEIGHT_REGULARIZER = 1e-6
DROPOUT_REGULARIZER = 1e-5


def _round_up(x, m):
    return ((x + m - 1) // m) * m


def _pad2(a, rows, cols, fill=0.0):
    r, c = a.shape
    if r == rows and c == cols:
        return a
    return jnp.pad(a, ((0, rows - r), (0, cols - c)), constant_values=fill)


# ---------------------------------------------------------------------------
# Kernel 1: out = Linear(concrete_dropout(x)),  grid (B/tm, Dout/tn, Din/tk)
# ---------------------------------------------------------------------------
def _cd_linear_kernel(p_logit_ref, x_ref, u_ref, wt_ref, b_ref, out_ref, acc_ref):
    k = pl.program_id(2)

    @pl.when(k == 0)
    def _init():
        acc_ref[...] = jnp.zeros_like(acc_ref)

    # p-derived scalars, computed on a (1,1) tile once per grid step (negligible).
    p = jax.nn.sigmoid(jnp.full((1, 1), p_logit_ref[0, 0], jnp.float32))
    logit_p = jnp.log(p + _EPS) - jnp.log(1.0 - p + _EPS)

    # Concrete-dropout gate.  Fused logit(u): one divide + one log (not two logs).
    u = u_ref[...]
    logit_u = jnp.log((u + _EPS) / (1.0 - u + _EPS))
    drop_prob = jax.nn.sigmoid((logit_u + logit_p) * (1.0 / _TEMP))
    xd = x_ref[...] * (1.0 - drop_prob)       # 1/(1-p) scale folded into finalize

    # MXU matmul; inputs follow the weight dtype (bf16 on v6e/v7x if requested),
    # accumulation always f32.
    acc_ref[...] += jnp.dot(xd.astype(wt_ref.dtype), wt_ref[...],
                            preferred_element_type=jnp.float32)

    @pl.when(k == pl.num_programs(2) - 1)
    def _finalize():
        inv_retain = 1.0 / (1.0 - p)          # (1,1), exact
        out_ref[...] = (acc_ref[...] * inv_retain + b_ref[...]).astype(out_ref.dtype)


# ---------------------------------------------------------------------------
# Kernel 2: regularization = wr*sum(param^2)/(1-p) + dr*Din*(p log p + (1-p) log(1-p))
# Sequential grid over weight tiles so every parameter is counted exactly once.
# ---------------------------------------------------------------------------
def _cd_reg_kernel(p_logit_ref, wt_ref, b_ref, reg_ref, ssq_ref, *,
                   input_dim, weight_reg, dropout_reg):
    j = pl.program_id(0)   # Dout tiles
    k = pl.program_id(1)   # Din tiles

    @pl.when((j == 0) & (k == 0))
    def _init():
        ssq_ref[...] = jnp.zeros_like(ssq_ref)

    w = wt_ref[...]
    ssq_ref[...] += jnp.sum(w * w)

    @pl.when(k == 0)                           # each bias tile counted once
    def _bias():
        bv = b_ref[...]
        ssq_ref[...] += jnp.sum(bv * bv)

    @pl.when((j == pl.num_programs(0) - 1) & (k == pl.num_programs(1) - 1))
    def _finalize():
        p = jax.nn.sigmoid(jnp.full((1, 1), p_logit_ref[0, 0], jnp.float32))
        w_term = weight_reg * ssq_ref[...] / (1.0 - p)
        d_term = (p * jnp.log(p) + (1.0 - p) * jnp.log(1.0 - p)) * (dropout_reg * input_dim)
        reg_ref[...] = w_term + d_term


# ---------------------------------------------------------------------------
# Wrapper
# ---------------------------------------------------------------------------
def concrete_dropout_linear(p_logit, x, noise, w, b, *,
                            weight_regularizer=WEIGHT_REGULARIZER,
                            dropout_regularizer=DROPOUT_REGULARIZER,
                            tm=256, tn=512, tk=512,
                            matmul_dtype=jnp.float32):
    """ConcreteDropout forward: (layer(concrete_dropout(x)), regularization).

    p_logit: (1,1) f32; x, noise: (B, Din) f32; w: (Dout, Din); b: (Dout,).
    `noise` plays the role of torch.rand_like(x).
    Default tiles (256, 512, 512) are MXU-aligned and use ~5.5 MiB of live VMEM
    with double buffering (fits v5e/v6e/v7x); pass smaller tiles for tiny layers.
    """
    B, Din = x.shape
    Dout, Din_w = w.shape
    assert Din_w == Din, "weight / input dim mismatch"

    x = jnp.asarray(x, jnp.float32)
    noise = jnp.asarray(noise, jnp.float32)
    w_t = jnp.asarray(w, jnp.float32).T                      # (Din, Dout)
    b2 = jnp.asarray(b, jnp.float32).reshape(1, Dout)
    p2 = jnp.asarray(p_logit, jnp.float32).reshape(1, 1)

    # Effective tiles: (8,128)-aligned, clamped to the (padded) problem size.
    tm_e = min(tm, _round_up(B, 8))
    tk_e = min(tk, _round_up(Din, 128))
    tn_e = min(tn, _round_up(Dout, 128))

    # Lane-dense padding (last dims become multiples of 128 via the tiles).
    B_p = _round_up(B, tm_e)
    Din_p = _round_up(Din, tk_e)
    Dout_p = _round_up(Dout, tn_e)

    x_p = _pad2(x, B_p, Din_p)
    u_p = _pad2(noise, B_p, Din_p, fill=0.5)                 # logit(0.5) == 0, harmless
    wt_p = _pad2(w_t, Din_p, Dout_p)                         # zero pad -> ssq unchanged
    b_p = _pad2(b2, 1, Dout_p)
    wt_mxu = wt_p.astype(matmul_dtype)                       # bf16 fast path on v6e/v7x

    grid = (B_p // tm_e, Dout_p // tn_e, Din_p // tk_e)

    out_p = pl.pallas_call(
        _cd_linear_kernel,
        out_shape=jax.ShapeDtypeStruct((B_p, Dout_p), jnp.float32),
        grid=grid,
        in_specs=[
            pl.BlockSpec(memory_space=pltpu.MemorySpace.SMEM),       # p_logit (scalar)
            pl.BlockSpec((tm_e, tk_e), lambda i, j, k: (i, k)),      # x
            pl.BlockSpec((tm_e, tk_e), lambda i, j, k: (i, k)),      # uniform noise
            pl.BlockSpec((tk_e, tn_e), lambda i, j, k: (k, j)),      # w^T
            pl.BlockSpec((1, tn_e), lambda i, j, k: (0, j)),         # bias
        ],
        out_specs=pl.BlockSpec((tm_e, tn_e), lambda i, j, k: (i, j)),
        scratch_shapes=[pltpu.VMEM((tm_e, tn_e), jnp.float32)],
        compiler_params=pltpu.CompilerParams(
            dimension_semantics=("parallel", "parallel", "arbitrary")),
    )(p2, x_p, u_p, wt_mxu, b_p)

    reg_kernel = functools.partial(
        _cd_reg_kernel,
        input_dim=float(Din),                   # == x[0].numel() for a 2-D input
        weight_reg=float(weight_regularizer),
        dropout_reg=float(dropout_regularizer))

    reg = pl.pallas_call(
        reg_kernel,
        out_shape=jax.ShapeDtypeStruct((1, 1), jnp.float32),
        grid=(Dout_p // tn_e, Din_p // tk_e),
        in_specs=[
            pl.BlockSpec(memory_space=pltpu.MemorySpace.SMEM),       # p_logit (scalar)
            pl.BlockSpec((tk_e, tn_e), lambda j, k: (k, j)),         # w^T (f32)
            pl.BlockSpec((1, tn_e), lambda j, k: (0, j)),            # bias
        ],
        out_specs=pl.BlockSpec((1, 1), lambda j, k: (0, 0)),
        scratch_shapes=[pltpu.VMEM((1, 1), jnp.float32)],
        compiler_params=pltpu.CompilerParams(
            dimension_semantics=("arbitrary", "arbitrary")),
    )(p2, wt_p, b_p)

    return out_p[:B, :Dout], reg[0, 0]


# ---------------------------------------------------------------------------
# Pure-JAX reference (mirror of the PyTorch forward) for correctness checking.
# ---------------------------------------------------------------------------
def _reference(p_logit, x, noise, w, b,
               weight_regularizer=WEIGHT_REGULARIZER,
               dropout_regularizer=DROPOUT_REGULARIZER):
    eps, temp = 1e-7, 0.1
    p = jax.nn.sigmoid(p_logit[0, 0])
    drop_prob = (jnp.log(p + eps) - jnp.log(1 - p + eps)
                 + jnp.log(noise + eps) - jnp.log(1 - noise + eps))
    drop_prob = jax.nn.sigmoid(drop_prob / temp)
    xd = x * (1 - drop_prob) / (1 - p)
    out = xd @ w.T + b
    sum_sq = jnp.sum(w ** 2) + jnp.sum(b ** 2)
    wr = weight_regularizer * sum_sq / (1 - p)
    dr = p * jnp.log(p) + (1 - p) * jnp.log(1 - p)
    dr = dr * (dropout_regularizer * x.shape[1])
    return out, wr + dr


if __name__ == "__main__":
    # Small but multi-tile problem; D_OUT deliberately not a multiple of 128 so
    # the lane-dense padding path in the wrapper is exercised.
    B, D_IN, D_OUT = 256, 384, 200

    # p_logit: uniform(init_min_logit, init_max_logit) with init_min == init_max == 0.1
    init = float(np.log(0.1) - np.log(1.0 - 0.1))
    p_logit = jnp.full((1, 1), init, jnp.float32)

    key = jax.random.PRNGKey(0)
    kx, kn, kw, kb = jax.random.split(key, 4)
    x = jax.random.normal(kx, (B, D_IN), jnp.float32)
    noise = jax.random.uniform(kn, (B, D_IN), jnp.float32, minval=0.0, maxval=1.0)
    w = jax.random.normal(kw, (D_OUT, D_IN), jnp.float32) * 0.1   # nn.Linear weight
    b = jax.random.normal(kb, (D_OUT,), jnp.float32) * 0.1        # nn.Linear bias

    out_ref, reg_ref = _reference(p_logit, x, noise, w, b)

    # f32-MXU path (bit-faithful to the PyTorch module). Small 128 tiles so the
    # demo runs a real multi-point (2, 2, 3) pipelined grid at these small shapes.
    out, reg = concrete_dropout_linear(p_logit, x, noise, w, b,
                                       tm=128, tn=128, tk=128)
    jax.block_until_ready((out, reg))
    np.testing.assert_allclose(np.asarray(out), np.asarray(out_ref),
                               rtol=1e-3, atol=1e-3)
    np.testing.assert_allclose(np.asarray(reg), np.asarray(reg_ref),
                               rtol=1e-4, atol=1e-6)

    # bf16-MXU fast path (v6e/v7x): f32 gate, bf16 matmul inputs, f32 accumulation.
    out_bf, reg_bf = concrete_dropout_linear(p_logit, x, noise, w, b,
                                             tm=128, tn=128, tk=128,
                                             matmul_dtype=jnp.bfloat16)
    jax.block_until_ready((out_bf, reg_bf))
    np.testing.assert_allclose(np.asarray(out_bf), np.asarray(out_ref),
                               rtol=5e-2, atol=5e-2)
    np.testing.assert_allclose(np.asarray(reg_bf), np.asarray(reg_ref),
                               rtol=1e-4, atol=1e-6)

    print("KERNEL_OK")
</pallas_src>

<mosaic_0001>
module attributes {stable_mosaic.version = 11 : i64} {
  func.func @_cd_linear_kernel(%arg0: i32, %arg1: i32, %arg2: i32, %arg3: memref<1x1xf32, #tpu.memory_space<smem>>, %arg4: memref<128x128xf32, #tpu.memory_space<vmem>>, %arg5: memref<128x128xf32, #tpu.memory_space<vmem>>, %arg6: memref<128x128xf32, #tpu.memory_space<vmem>>, %arg7: memref<1x128xf32, #tpu.memory_space<vmem>>, %arg8: memref<128x128xf32, #tpu.memory_space<vmem>>, %arg9: memref<128x128xf32, #tpu.memory_space<vmem>>) attributes {dimension_semantics = [#tpu.dimension_semantics<parallel>, #tpu.dimension_semantics<parallel>, #tpu.dimension_semantics<arbitrary>], iteration_bounds = array<i64: 2, 2, 3>, scalar_prefetch = 0 : i64, scratch_operands = 1 : i64, tpu.core_type = #tpu.core_type<tc>, window_params = [{transform_indices = @transform_0, window_bounds = array<i64: 1, 1>}, {transform_indices = @transform_1, window_bounds = array<i64: 128, 128>}, {transform_indices = @transform_2, window_bounds = array<i64: 128, 128>}, {transform_indices = @transform_3, window_bounds = array<i64: 128, 128>}, {transform_indices = @transform_4, window_bounds = array<i64: 1, 128>}, {transform_indices = @transform_5, window_bounds = array<i64: 128, 128>}]} {
    %c0_i32 = arith.constant 0 : i32
    %0 = arith.cmpi eq, %arg2, %c0_i32 : i32
    %1 = arith.extui %0 : i1 to i32
    %c0_i32_0 = arith.constant 0 : i32
    %2 = arith.cmpi ne, %1, %c0_i32_0 : i32
    scf.if %2 {
      %cst_23 = arith.constant 0.000000e+00 : f32
      %49 = vector.broadcast %cst_23 : f32 to vector<128x128xf32>
      %c0_24 = arith.constant 0 : index
      %c0_25 = arith.constant 0 : index
      %50 = vector.load %arg9[%c0_24, %c0_25] : memref<128x128xf32, #tpu.memory_space<vmem>>, vector<128x128xf32>
      tpu.vector_store %arg9[%c0_24, %c0_25], %49 {strides = array<i32>} : memref<128x128xf32, #tpu.memory_space<vmem>>, vector<128x128xf32>,
    } else {
    }
    %c0 = arith.constant 0 : index
    %c0_1 = arith.constant 0 : index
    %3 = memref.load %arg3[%c0, %c0_1] : memref<1x1xf32, #tpu.memory_space<smem>>
    %4 = vector.broadcast %3 : f32 to vector<1x1xf32>
    %5 = arith.negf %4 : vector<1x1xf32>
    %6 = math.exp %5 : vector<1x1xf32>
    %cst = arith.constant 1.000000e+00 : f32
    %7 = vector.broadcast %cst : f32 to vector<1x1xf32>
    %8 = arith.addf %7, %6 : vector<1x1xf32>
    %9 = arith.divf %7, %8 : vector<1x1xf32>
    %cst_2 = arith.constant 1.000000e-07 : f32
    %10 = vector.broadcast %cst_2 : f32 to vector<1x1xf32>
    %11 = arith.addf %9, %10 : vector<1x1xf32>
    %12 = math.log %11 : vector<1x1xf32>
    %cst_3 = arith.constant 1.000000e+00 : f32
    %13 = vector.broadcast %cst_3 : f32 to vector<1x1xf32>
    %14 = arith.subf %13, %9 : vector<1x1xf32>
    %cst_4 = arith.constant 1.000000e-07 : f32
    %15 = vector.broadcast %cst_4 : f32 to vector<1x1xf32>
    %16 = arith.addf %14, %15 : vector<1x1xf32>
    %17 = math.log %16 : vector<1x1xf32>
    %18 = arith.subf %12, %17 : vector<1x1xf32>
    %c0_5 = arith.constant 0 : index
    %c0_6 = arith.constant 0 : index
    %19 = vector.load %arg5[%c0_5, %c0_6] : memref<128x128xf32, #tpu.memory_space<vmem>>, vector<128x128xf32>
    %cst_7 = arith.constant 1.000000e-07 : f32
    %20 = vector.broadcast %cst_7 : f32 to vector<128x128xf32>
    %21 = arith.addf %19, %20 : vector<128x128xf32>
    %cst_8 = arith.constant 1.000000e+00 : f32
    %22 = vector.broadcast %cst_8 : f32 to vector<128x128xf32>
    %23 = arith.subf %22, %19 : vector<128x128xf32>
    %cst_9 = arith.constant 1.000000e-07 : f32
    %24 = vector.broadcast %cst_9 : f32 to vector<128x128xf32>
    %25 = arith.addf %23, %24 : vector<128x128xf32>
    %26 = arith.divf %21, %25 : vector<128x128xf32>
    %27 = math.log %26 : vector<128x128xf32>
    %28 = vector.broadcast %18 : vector<1x1xf32> to vector<128x128xf32>
    %29 = arith.addf %27, %28 : vector<128x128xf32>
    %cst_10 = arith.constant 1.000000e+01 : f32
    %30 = vector.broadcast %cst_10 : f32 to vector<128x128xf32>
    %31 = arith.mulf %29, %30 : vector<128x128xf32>
    %32 = arith.negf %31 : vector<128x128xf32>
    %33 = math.exp %32 : vector<128x128xf32>
    %cst_11 = arith.constant 1.000000e+00 : f32
    %34 = vector.broadcast %cst_11 : f32 to vector<128x128xf32>
    %35 = arith.addf %34, %33 : vector<128x128xf32>
    %36 = arith.divf %34, %35 : vector<128x128xf32>
    %c0_12 = arith.constant 0 : index
    %c0_13 = arith.constant 0 : index
    %37 = vector.load %arg4[%c0_12, %c0_13] : memref<128x128xf32, #tpu.memory_space<vmem>>, vector<128x128xf32>
    %cst_14 = arith.constant 1.000000e+00 : f32
    %38 = vector.broadcast %cst_14 : f32 to vector<128x128xf32>
    %39 = arith.subf %38, %36 : vector<128x128xf32>
    %40 = arith.mulf %37, %39 : vector<128x128xf32>
    %c0_15 = arith.constant 0 : index
    %c0_16 = arith.constant 0 : index
    %41 = vector.load %arg9[%c0_15, %c0_16] : memref<128x128xf32, #tpu.memory_space<vmem>>, vector<128x128xf32>
    %c0_17 = arith.constant 0 : index
    %c0_18 = arith.constant 0 : index
    %42 = vector.load %arg6[%c0_17, %c0_18] : memref<128x128xf32, #tpu.memory_space<vmem>>, vector<128x128xf32>
    %cst_19 = arith.constant dense<0.000000e+00> : vector<128x128xf32>
    %43 = tpu.matmul %40, %42, %cst_19 {dimension_numbers = #tpu.dot_dimension_numbers<[1], [0], [0], [1], [0, 0, 1, 1], [], []>} : vector<128x128xf32>, vector<128x128xf32>, vector<128x128xf32> -> vector<128x128xf32>
    %44 = arith.addf %41, %43 : vector<128x128xf32>
    %c0_20 = arith.constant 0 : index
    %c0_21 = arith.constant 0 : index
    %45 = vector.load %arg9[%c0_20, %c0_21] : memref<128x128xf32, #tpu.memory_space<vmem>>, vector<128x128xf32>
    tpu.vector_store %arg9[%c0_20, %c0_21], %44 {strides = array<i32>} : memref<128x128xf32, #tpu.memory_space<vmem>>, vector<128x128xf32>,
    %c2_i32 = arith.constant 2 : i32
    %46 = arith.cmpi eq, %arg2, %c2_i32 : i32
    %47 = arith.extui %46 : i1 to i32
    %c0_i32_22 = arith.constant 0 : i32
    %48 = arith.cmpi ne, %47, %c0_i32_22 : i32
    scf.if %48 {
      %cst_23 = arith.constant 1.000000e+00 : f32
      %49 = vector.broadcast %cst_23 : f32 to vector<1x1xf32>
      %50 = arith.subf %49, %9 : vector<1x1xf32>
      %cst_24 = arith.constant 1.000000e+00 : f32
      %51 = vector.broadcast %cst_24 : f32 to vector<1x1xf32>
      %52 = arith.divf %51, %50 : vector<1x1xf32>
      %c0_25 = arith.constant 0 : index
      %c0_26 = arith.constant 0 : index
      %53 = vector.load %arg9[%c0_25, %c0_26] : memref<128x128xf32, #tpu.memory_space<vmem>>, vector<128x128xf32>
      %54 = vector.broadcast %52 : vector<1x1xf32> to vector<128x128xf32>
      %55 = arith.mulf %53, %54 : vector<128x128xf32>
      %c0_27 = arith.constant 0 : index
      %c0_28 = arith.constant 0 : index
      %56 = vector.load %arg7[%c0_27, %c0_28] : memref<1x128xf32, #tpu.memory_space<vmem>>, vector<1x128xf32>
      %57 = vector.broadcast %56 : vector<1x128xf32> to vector<128x128xf32>
      %58 = arith.addf %55, %57 : vector<128x128xf32>
      %c0_29 = arith.constant 0 : index
      %c0_30 = arith.constant 0 : index
      %59 = vector.load %arg8[%c0_29, %c0_30] : memref<128x128xf32, #tpu.memory_space<vmem>>, vector<128x128xf32>
      tpu.vector_store %arg8[%c0_29, %c0_30], %58 {strides = array<i32>} : memref<128x128xf32, #tpu.memory_space<vmem>>, vector<128x128xf32>,
    } else {
    }
    return
  }
  func.func @transform_0(%arg0: i32, %arg1: i32, %arg2: i32) -> (i32, i32) {
    %c0_i32 = arith.constant 0 : i32
    %c0_i32_0 = arith.constant 0 : i32
    %c0_i32_1 = arith.constant 0 : i32
    return %c0_i32, %c0_i32_0 : i32, i32
  }
  func.func @transform_1(%arg0: i32, %arg1: i32, %arg2: i32) -> (i32, i32) {
    %c0_i32 = arith.constant 0 : i32
    return %arg0, %arg2 : i32, i32
  }
  func.func @transform_2(%arg0: i32, %arg1: i32, %arg2: i32) -> (i32, i32) {
    %c0_i32 = arith.constant 0 : i32
    return %arg0, %arg2 : i32, i32
  }
  func.func @transform_3(%arg0: i32, %arg1: i32, %arg2: i32) -> (i32, i32) {
    %c0_i32 = arith.constant 0 : i32
    return %arg2, %arg1 : i32, i32
  }
  func.func @transform_4(%arg0: i32, %arg1: i32, %arg2: i32) -> (i32, i32) {
    %c0_i32 = arith.constant 0 : i32
    %c0_i32_0 = arith.constant 0 : i32
    return %c0_i32, %arg1 : i32, i32
  }
  func.func @transform_5(%arg0: i32, %arg1: i32, %arg2: i32) -> (i32, i32) {
    %c0_i32 = arith.constant 0 : i32
    return %arg0, %arg1 : i32, i32
  }
}

</mosaic_0001>

<llo_original>
// kernel: tpu_custom_call.1
$region0: #{tpu_custom_call.1}
  #allocation0 [shape = 'u32[]', space=smem, size = 0x4, offset = 0x4, fixed_abs, tag = 'smem constant byte address 0x4 - core index']
  #allocation1 [shape = 'u32[144,128]{1,0:T(1,128)}', space=vmem, size = 0x12000, scoped, tag = 'internal scratch']
  #allocation2 [shape = 'f32[128,128]{1,0:T(8,128)}', space=vmem, size = 0x10000, scoped, tag = 'scratch operand']
  #allocation3 [shape = 'f32[1,1]{1,0:T(1,128)S(6)}', space=smem, size = 0x200, scoped, tag = 'scoped memory for tpu_custom_call.1']
  %s0 = inlined_call_operand.<no memory space> [shape: f32[1,1], index: 0, kind: input, shape index: {}]
  %s1 = inlined_call_operand.hbm [shape: f32[256,384], index: 1, kind: input, shape index: {}]
  %s2 = inlined_call_operand.hbm [shape: f32[256,384], index: 2, kind: input, shape index: {}]
  %s3 = inlined_call_operand.hbm [shape: f32[384,256], index: 3, kind: input, shape index: {}]
  %s4 = inlined_call_operand.vmem [shape: f32[1,256], index: 4, kind: input, shape index: {}]
  %s5 = inlined_call_operand.hbm [shape: f32[256,256], index: 5, kind: output, shape index: {}]
  %s6 = sld [smem:[#allocation0]]
  $region73: #{tpu_custom_call.1} parent=0
    _
  %s8 = ssub.s32 1, %s6
  %s9 = scalar_select 0, %s8, %s6
  %10 = sst [smem:[#allocation3]] %s0
  $region1: #{tpu_custom_call.1} parent=0
    #allocation4 [shape = 'u8[131072]{0}', space=vmem, size = 0x20000, scoped, tag = 'input window, operand 1']
    #allocation5 [shape = 's32[2]{0}', space=sflag, size = 0x8, scoped, tag = 'scoped memory for tpu_custom_call.1']
    #allocation6 [shape = 's32[2]{0}', space=sflag, size = 0x8, scoped, tag = 'scoped memory for tpu_custom_call.1']
    #allocation7 [shape = 'u8[131072]{0}', space=vmem, size = 0x20000, scoped, tag = 'input window, operand 2']
    #allocation8 [shape = 's32[2]{0}', space=sflag, size = 0x8, scoped, tag = 'scoped memory for tpu_custom_call.1']
    #allocation9 [shape = 'u8[131072]{0}', space=vmem, size = 0x20000, scoped, tag = 'input window, operand 3']
    #allocation10 [shape = 'u8[131072]{0}', space=vmem, size = 0x20000, scoped, tag = 'output window, operand 0']
    %11 = vsyncpa [#allocation5], 0
    %s12 = scalar_lea.sflag [#allocation5], 1
    %13 = vsyncpa %s12, 0
    %14 = vsyncpa [#allocation8], 0
    %s15 = scalar_lea.sflag [#allocation8], 1
    %16 = vsyncpa %s15, 0
    %17 = vsyncpa [#allocation6], 0
    %s18 = scalar_lea.sflag [#allocation6], 1
    %19 = vsyncpa %s18, 0
    loop: start=0, step=1, limit=14
    $region2: #{tpu_custom_call.1} parent=1 // loop_pre_header
      _
    $region3: #{tpu_custom_call.1} parent=1 // loop_header
      %s21 = sphi 0, %s25
      %p22 = scmp.ge.s32.totalorder %s21, 14
      %s28 = sphi 0, %s47
      %s29 = sphi 0, %s43
      %s30 = sphi 0, %s39
      %s31 = sphi 0, %s28
      %s32 = sphi 0, %s29
      %s33 = sphi 0, %s30
      %s34 = sphi 0, %s31
      %s35 = sphi 0, %s32
      %s36 = sphi 0, %s33
      %s48 = sphi 0, %s48
      %s50 = sphi 0, %s48
      %s51 = sphi 0, %s50
      %s65 = sphi 0, %s51
      %s73 = sphi 0, %s75
      %s76 = sphi 0, %s73
      %s77 = sphi 0, %s76
      %s93 = sphi 0, %s77
      %s101 = sphi 0, %s103
      %s104 = sphi 0, %s101
      %s105 = sphi 0, %s104
      %s121 = sphi 0, %s105
      %s129 = sphi 0, %s131
      %s132 = sphi 0, %s129
      %s133 = sphi 0, %s132
      %s149 = sphi 0, %s133
      %s155 = sphi 0, %s157
      %s158 = sphi 0, %s155
      %s159 = sphi 0, %s158
      %s175 = sphi 0, %s159
      %s183 = sphi 0, %s185
      %s186 = sphi 0, %s183
      %s187 = sphi 0, %s186
      %s203 = sphi 0, %s187
    $region4: #{tpu_custom_call.1} parent=1 // loop_header_branch
      %24 = sbr.rel (%p22) target = $region8
    $region5: #{tpu_custom_call.1} parent=1 // loop_body
      %s26 = ssub.s32 %s21, 1
      %s27 = ssub.s32 %s21, 2
      %s37 = sadd.s32 1, %s30
      %p38 = scmp.ge.s32.totalorder %s37, 3
      %s39 = scalar_select %p38, 0, %s37
      %s40 = sadd.s32 1, %s29
      %s41 = scalar_select %p38, %s40, %s29
      %p42 = scmp.ge.s32.totalorder %s41, 2
      %s43 = scalar_select %p42, 0, %s41
      %s44 = sadd.s32 1, %s28
      %s45 = scalar_select %p42, %s44, %s28
      %p46 = scmp.ge.s32.totalorder %s45, 2
      %s47 = scalar_select %p46, 0, %s45
      %s49 = sadd.s32 %s48, 1
      %p52 = scmp.eq.s32.totalorder %s21, 11
      %p53 = scmp.ne.s32.totalorder %s48, %s50
      %p54 = scmp.eq.s32.totalorder %s21, 0
      %p55 = por %p53, %p54
      %p56 = scmp.ne.s32.totalorder %s48, %s50
      %p57 = scmp.eq.s32.totalorder %s26, 11
      %p58 = por %p56, %p57
      %p59 = scmp.ne.s32.totalorder %s50, %s51
      %p60 = scmp.eq.s32.totalorder %s26, 0
      %p61 = por %p59, %p60
      %p62 = scmp.ne.s32.totalorder %s50, %s51
      %p63 = scmp.eq.s32.totalorder %s27, 11
      %p64 = por %p62, %p63
      %p66 = scmp.ne.s32.totalorder %s51, %s65
      %p67 = scmp.eq.s32.totalorder %s27, 0
      %p68 = por %p66, %p67
      %s69 = ssub.s32 %s28, %s47
      %s70 = ssub.s32 %s30, %s39
      %s71 = sor.u32 %s69, %s70
      %p72 = scmp.eq.s32.totalorder %s71, 0
      %s74 = sadd.s32 %s73, 1
      %s75 = scalar_select %p72, %s73, %s74
      %p78 = pneg %p72
      %p79 = scmp.eq.s32.totalorder %s21, 11
      %p80 = por %p78, %p79
      %p81 = scmp.ne.s32.totalorder %s73, %s76
      %p82 = scmp.eq.s32.totalorder %s21, 0
      %p83 = por %p81, %p82
      %p84 = scmp.ne.s32.totalorder %s73, %s76
      %p85 = scmp.eq.s32.totalorder %s26, 11
      %p86 = por %p84, %p85
      %p87 = scmp.ne.s32.totalorder %s76, %s77
      %p88 = scmp.eq.s32.totalorder %s26, 0
      %p89 = por %p87, %p88
      %p90 = scmp.ne.s32.totalorder %s76, %s77
      %p91 = scmp.eq.s32.totalorder %s27, 11
      %p92 = por %p90, %p91
      %p94 = scmp.ne.s32.totalorder %s77, %s93
      %p95 = scmp.eq.s32.totalorder %s27, 0
      %p96 = por %p94, %p95
      %s97 = ssub.s32 %s28, %s47
      %s98 = ssub.s32 %s30, %s39
      %s99 = sor.u32 %s97, %s98
      %p100 = scmp.eq.s32.totalorder %s99, 0
      %s102 = sadd.s32 %s101, 1
      %s103 = scalar_select %p100, %s101, %s102
      %p106 = pneg %p100
      %p107 = scmp.eq.s32.totalorder %s21, 11
      %p108 = por %p106, %p107
      %p109 = scmp.ne.s32.totalorder %s101, %s104
      %p110 = scmp.eq.s32.totalorder %s21, 0
      %p111 = por %p109, %p110
      %p112 = scmp.ne.s32.totalorder %s101, %s104
      %p113 = scmp.eq.s32.totalorder %s26, 11
      %p114 = por %p112, %p113
      %p115 = scmp.ne.s32.totalorder %s104, %s105
      %p116 = scmp.eq.s32.totalorder %s26, 0
      %p117 = por %p115, %p116
      %p118 = scmp.ne.s32.totalorder %s104, %s105
      %p119 = scmp.eq.s32.totalorder %s27, 11
      %p120 = por %p118, %p119
      %p122 = scmp.ne.s32.totalorder %s105, %s121
      %p123 = scmp.eq.s32.totalorder %s27, 0
      %p124 = por %p122, %p123
      %s125 = ssub.s32 %s30, %s39
      %s126 = ssub.s32 %s29, %s43
      %s127 = sor.u32 %s125, %s126
      %p128 = scmp.eq.s32.totalorder %s127, 0
      %s130 = sadd.s32 %s129, 1
      %s131 = scalar_select %p128, %s129, %s130
      %p134 = pneg %p128
      %p135 = scmp.eq.s32.totalorder %s21, 11
      %p136 = por %p134, %p135
      %p137 = scmp.ne.s32.totalorder %s129, %s132
      %p138 = scmp.eq.s32.totalorder %s21, 0
      %p139 = por %p137, %p138
      %p140 = scmp.ne.s32.totalorder %s129, %s132
      %p141 = scmp.eq.s32.totalorder %s26, 11
      %p142 = por %p140, %p141
      %p143 = scmp.ne.s32.totalorder %s132, %s133
      %p144 = scmp.eq.s32.totalorder %s26, 0
      %p145 = por %p143, %p144
      %p146 = scmp.ne.s32.totalorder %s132, %s133
      %p147 = scmp.eq.s32.totalorder %s27, 11
      %p148 = por %p146, %p147
      %p150 = scmp.ne.s32.totalorder %s133, %s149
      %p151 = scmp.eq.s32.totalorder %s27, 0
      %p152 = por %p150, %p151
      %s153 = ssub.s32 %s29, %s43
      %p154 = scmp.eq.s32.totalorder %s153, 0
      %s156 = sadd.s32 %s155, 1
      %s157 = scalar_select %p154, %s155, %s156
      %p160 = pneg %p154
      %p161 = scmp.eq.s32.totalorder %s21, 11
      %p162 = por %p160, %p161
      %p163 = scmp.ne.s32.totalorder %s155, %s158
      %p164 = scmp.eq.s32.totalorder %s21, 0
      %p165 = por %p163, %p164
      %p166 = scmp.ne.s32.totalorder %s155, %s158
      %p167 = scmp.eq.s32.totalorder %s26, 11
      %p168 = por %p166, %p167
      %p169 = scmp.ne.s32.totalorder %s158, %s159
      %p170 = scmp.eq.s32.totalorder %s26, 0
      %p171 = por %p169, %p170
      %p172 = scmp.ne.s32.totalorder %s158, %s159
      %p173 = scmp.eq.s32.totalorder %s27, 11
      %p174 = por %p172, %p173
      %p176 = scmp.ne.s32.totalorder %s159, %s175
      %p177 = scmp.eq.s32.totalorder %s27, 0
      %p178 = por %p176, %p177
      %s179 = ssub.s32 %s28, %s47
      %s180 = ssub.s32 %s29, %s43
      %s181 = sor.u32 %s179, %s180
      %p182 = scmp.eq.s32.totalorder %s181, 0
      %s184 = sadd.s32 %s183, 1
      %s185 = scalar_select %p182, %s183, %s184
      %p188 = pneg %p182
      %p189 = scmp.eq.s32.totalorder %s21, 11
      %p190 = por %p188, %p189
      %p191 = scmp.ne.s32.totalorder %s183, %s186
      %p192 = scmp.eq.s32.totalorder %s21, 0
      %p193 = por %p191, %p192
      %p194 = scmp.ne.s32.totalorder %s183, %s186
      %p195 = scmp.eq.s32.totalorder %s26, 11
      %p196 = por %p194, %p195
      %p197 = scmp.ne.s32.totalorder %s186, %s187
      %p198 = scmp.eq.s32.totalorder %s26, 0
      %p199 = por %p197, %p198
      %p200 = scmp.ne.s32.totalorder %s186, %s187
      %p201 = scmp.eq.s32.totalorder %s27, 11
      %p202 = por %p200, %p201
      %p204 = scmp.ne.s32.totalorder %s187, %s203
      %p205 = scmp.eq.s32.totalorder %s27, 0
      %p206 = por %p204, %p205
      %p207 = scmp.le.s32.totalorder 1, %s21
      %p208 = scmp.lt.s32.totalorder %s21, 13
      %p209 = pnand %p207, %p208
      %p210 = pneg %p209
      // Predicated region
      $region9: #{tpu_custom_call.1} parent=5 // pred_check
        _
      $region10: #{tpu_custom_call.1} parent=5 // pred_check_branch
        %212 = sbr.rel (%p209) target = $region12
      $region11: #{tpu_custom_call.1} parent=5 // pred_region
        %s213 = ssub.s32 %s21, 1
        // Predicated region
        $region13: #{tpu_custom_call.1} parent=11 // pred_check
          %p214 = pneg %p61
        $region14: #{tpu_custom_call.1} parent=11 // pred_check_branch
          %216 = sbr.rel (%p214) target = $region16
        $region15: #{tpu_custom_call.1} parent=11 // pred_region
          _
        $region16: #{tpu_custom_call.1} parent=11 // pred_fallthru
          _
      $region12: #{tpu_custom_call.1} parent=5 // pred_fallthru
        _
      %p217 = scmp.lt.s32.totalorder %s21, 12
      // Predicated region
      $region17: #{tpu_custom_call.1} parent=5 // pred_check
        %p218 = pneg %p217
      $region18: #{tpu_custom_call.1} parent=5 // pred_check_branch
        %220 = sbr.rel (%p218) target = $region20
      $region19: #{tpu_custom_call.1} parent=5 // pred_region
        // Predicated region
        $region21: #{tpu_custom_call.1} parent=19 // pred_check
          %p221 = pneg %p83
        $region22: #{tpu_custom_call.1} parent=19 // pred_check_branch
          %223 = sbr.rel (%p221) target = $region24
        $region23: #{tpu_custom_call.1} parent=19 // pred_region
          %s224 = sand.u32 %s73, 1
          %s225 = scalar_lea.sflag [#allocation5], %s224
          %s226 = sand.u32 %s73, 1
          %s227 = smul.addr %s226, 128
          %s228 = scalar_lea.vmem [#allocation4], %s227
          %s229 = smul.u32 16, %s28
          %s231 = ssub.s32 2048, 2048
          %232 = vsyncadd %s225, %s231
          %s233 = smul.addr %s229, 3
          %s234 = sadd.s32 %s30, %s233
          %s235 = smul.addr %s234, 128
          %s236 = scalar_lea.hbm %s1, %s235
          %s237 = sshll.u32 %s228, 4
          %s238 = int_to_ptr.vmem [resolvable:$true] %s237
          %243 = dma.hbm_to_vmem [thread:$0]  %s236, 2048, %s238, %s225, 384, 128, 8
        $region24: #{tpu_custom_call.1} parent=19 // pred_fallthru
          _
        // Predicated region
        $region25: #{tpu_custom_call.1} parent=19 // pred_check
          %p244 = pneg %p111
        $region26: #{tpu_custom_call.1} parent=19 // pred_check_branch
          %246 = sbr.rel (%p244) target = $region28
        $region27: #{tpu_custom_call.1} parent=19 // pred_region
          %s247 = sand.u32 %s21, 1
          %s248 = scalar_lea.sflag [#allocation8], %s247
          %s249 = sand.u32 %s101, 1
          %s250 = smul.addr %s249, 128
          %s251 = scalar_lea.vmem [#allocation7], %s250
          %s252 = smul.u32 16, %s28
          %s254 = ssub.s32 2048, 2048
          %255 = vsyncadd %s248, %s254
          %s256 = smul.addr %s252, 3
          %s257 = sadd.s32 %s30, %s256
          %s258 = smul.addr %s257, 128
          %s259 = scalar_lea.hbm %s2, %s258
          %s260 = sshll.u32 %s251, 4
          %s261 = int_to_ptr.vmem [resolvable:$true] %s260
          %266 = dma.hbm_to_vmem [thread:$0]  %s259, 2048, %s261, %s248, 384, 128, 8
        $region28: #{tpu_custom_call.1} parent=19 // pred_fallthru
          _
        // Predicated region
        $region29: #{tpu_custom_call.1} parent=19 // pred_check
          %p267 = pneg %p139
        $region30: #{tpu_custom_call.1} parent=19 // pred_check_branch
          %269 = sbr.rel (%p267) target = $region32
        $region31: #{tpu_custom_call.1} parent=19 // pred_region
          %s270 = sand.u32 %s21, 1
          %s271 = scalar_lea.sflag [#allocation8], %s270
          %s272 = sand.u32 %s129, 1
          %s273 = smul.addr %s272, 128
          %s274 = scalar_lea.vmem [#allocation9], %s273
          %s275 = smul.u32 16, %s30
          %s277 = ssub.s32 2048, 2048
          %278 = vsyncadd %s271, %s277
          %s279 = smul.addr %s275, 2
          %s280 = sadd.s32 %s29, %s279
          %s281 = smul.addr %s280, 128
          %s282 = scalar_lea.hbm %s3, %s281
          %s283 = sshll.u32 %s274, 4
          %s284 = int_to_ptr.vmem [resolvable:$true] %s283
          %289 = dma.hbm_to_vmem [thread:$0]  %s282, 2048, %s284, %s271, 256, 128, 8
        $region32: #{tpu_custom_call.1} parent=19 // pred_fallthru
          _
        // Predicated region
        $region33: #{tpu_custom_call.1} parent=19 // pred_check
          %p290 = pneg %p165
        $region34: #{tpu_custom_call.1} parent=19 // pred_check_branch
          %292 = sbr.rel (%p290) target = $region36
        $region35: #{tpu_custom_call.1} parent=19 // pred_region
          %p293 = scmp.lt.s32.totalorder %s29, 1
          %s294 = scalar_select %p293, %s29, 1
          %s295 = scalar_lea.vmem %s4, %s294
        $region36: #{tpu_custom_call.1} parent=19 // pred_fallthru
          _
      $region20: #{tpu_custom_call.1} parent=5 // pred_fallthru
        _
      %p296 = scmp.le.s32.totalorder 1, %s21
      %p297 = scmp.lt.s32.totalorder %s21, 13
      %p298 = pnand %p296, %p297
      %p299 = pneg %p298
      // Predicated region
      $region37: #{tpu_custom_call.1} parent=5 // pred_check
        _
      $region38: #{tpu_custom_call.1} parent=5 // pred_check_branch
        %301 = sbr.rel (%p298) target = $region40
      $region39: #{tpu_custom_call.1} parent=5 // pred_region
        %s302 = ssub.s32 %s21, 1
        %s303 = sand.u32 %s76, 1
        %s304 = scalar_lea.sflag [#allocation5], %s303
        %s305 = sand.u32 %s76, 1
        %s306 = smul.addr %s305, 128
        %s307 = scalar_lea.vmem [#allocation4], %s306
        // Predicated region
        $region41: #{tpu_custom_call.1} parent=39 // pred_check
          %p308 = pneg %p89
        $region42: #{tpu_custom_call.1} parent=39 // pred_check_branch
          %310 = sbr.rel (%p308) target = $region44
        $region43: #{tpu_custom_call.1} parent=39 // pred_region
          %311 = dma.done %s304, 2048
        $region44: #{tpu_custom_call.1} parent=39 // pred_fallthru
          _
        %s312 = sand.u32 %s26, 1
        %s313 = scalar_lea.sflag [#allocation8], %s312
        %s314 = sand.u32 %s104, 1
        %s315 = smul.addr %s314, 128
        %s316 = scalar_lea.vmem [#allocation7], %s315
        // Predicated region
        $region45: #{tpu_custom_call.1} parent=39 // pred_check
          %p317 = pneg %p117
        $region46: #{tpu_custom_call.1} parent=39 // pred_check_branch
          %319 = sbr.rel (%p317) target = $region48
        $region47: #{tpu_custom_call.1} parent=39 // pred_region
          %320 = dma.done %s313, 2048
        $region48: #{tpu_custom_call.1} parent=39 // pred_fallthru
          _
        %s321 = sand.u32 %s26, 1
        %s322 = scalar_lea.sflag [#allocation8], %s321
        %s323 = sand.u32 %s132, 1
        %s324 = smul.addr %s323, 128
        %s325 = scalar_lea.vmem [#allocation9], %s324
        // Predicated region
        $region49: #{tpu_custom_call.1} parent=39 // pred_check
          %p326 = pneg %p145
        $region50: #{tpu_custom_call.1} parent=39 // pred_check_branch
          %328 = sbr.rel (%p326) target = $region52
        $region51: #{tpu_custom_call.1} parent=39 // pred_region
          %329 = dma.done %s322, 2048
        $region52: #{tpu_custom_call.1} parent=39 // pred_fallthru
          _
        %p330 = pneg %p61
        %p331 = pneg %p58
        %s332 = sand.u32 %s76, 1
        %s333 = scalar_lea.sflag [#allocation5], %s332
        %s334 = sand.u32 %s76, 1
        %s335 = smul.addr %s334, 128
        %s336 = scalar_lea.vmem [#allocation4], %s335
        %p337 = pneg %p89
        %p338 = pneg %p86
        %s339 = sand.u32 %s26, 1
        %s340 = scalar_lea.sflag [#allocation8], %s339
        %s341 = sand.u32 %s104, 1
        %s342 = smul.addr %s341, 128
        %s343 = scalar_lea.vmem [#allocation7], %s342
        %p344 = pneg %p117
        %p345 = pneg %p114
        %s346 = sand.u32 %s26, 1
        %s347 = scalar_lea.sflag [#allocation8], %s346
        %s348 = sand.u32 %s132, 1
        %s349 = smul.addr %s348, 128
        %s350 = scalar_lea.vmem [#allocation9], %s349
        %p351 = pneg %p145
        %p352 = pneg %p142
        %p353 = scmp.lt.s32.totalorder %s32, 1
        %s354 = scalar_select %p353, %s32, 1
        %s355 = scalar_lea.vmem %s4, %s354
        %p356 = pneg %p171
        %p357 = pneg %p168
        %p358 = pneg %p199
        %p359 = pneg %p196
        %s360 = sand.u32 %s186, 1
        %s361 = scalar_lea.sflag [#allocation6], %s360
        %s362 = sand.u32 %s186, 1
        %s363 = smul.addr %s362, 128
        %s364 = scalar_lea.vmem [#allocation10], %s363
        %s365 = smul.u32 16, %s31
        %s366 = smul.u32 16, %s31
        %s367 = smul.u32 16, %s33
        %p368 = scmp.lt.s32.totalorder %s32, 1
        %s369 = scalar_select %p368, %s32, 1
        %s370 = scalar_lea.vmem %s4, %s369
        %s371 = smul.u32 16, %s31
        %p372 = scmp.eq.s32.totalorder %s33, 0
        // Predicated region
        $region53: #{tpu_custom_call.1} parent=39 // pred_check
          %p373 = pneg %p372
        $region54: #{tpu_custom_call.1} parent=39 // pred_check_branch
          %375 = sbr.rel (%p373) target = $region56
        $region55: #{tpu_custom_call.1} parent=39 // pred_region
          %376 = vst [vmem:[#allocation2] sm:$0xff] 0.0
          %377 = vst [vmem:[#allocation2 + $0x8] sm:$0xff] 0.0
          %378 = vst [vmem:[#allocation2 + $0x10] sm:$0xff] 0.0
          %379 = vst [vmem:[#allocation2 + $0x18] sm:$0xff] 0.0
          %380 = vst [vmem:[#allocation2 + $0x20] sm:$0xff] 0.0
          %381 = vst [vmem:[#allocation2 + $0x28] sm:$0xff] 0.0
          %382 = vst [vmem:[#allocation2 + $0x30] sm:$0xff] 0.0
          %383 = vst [vmem:[#allocation2 + $0x38] sm:$0xff] 0.0
          %384 = vst [vmem:[#allocation2 + $0x40] sm:$0xff] 0.0
          %385 = vst [vmem:[#allocation2 + $0x48] sm:$0xff] 0.0
          %386 = vst [vmem:[#allocation2 + $0x50] sm:$0xff] 0.0
          %387 = vst [vmem:[#allocation2 + $0x58] sm:$0xff] 0.0
          %388 = vst [vmem:[#allocation2 + $0x60] sm:$0xff] 0.0
          %389 = vst [vmem:[#allocation2 + $0x68] sm:$0xff] 0.0
          %390 = vst [vmem:[#allocation2 + $0x70] sm:$0xff] 0.0
          %391 = vst [vmem:[#allocation2 + $0x78] sm:$0xff] 0.0
        $region56: #{tpu_custom_call.1} parent=39 // pred_fallthru
          _
        %s392 = sld [smem:[#allocation3]]
        %v393 = vstv %s392
        %v394 = vxor.u32 %v393, 2147483648
        %v395 = vmul.f32 %v394, 1.442695
        %v396 = vpow.pop %v395
        %v397 = vadd.f32 %v396, 1.0
        %v398 = vrcp.pop %v397
        %v399 = vmul.f32 1.0, %v398
        %v400 = vadd.f32 %v399, 1e-07
        %v401 = vlog2.pop %v400
        %v402 = vmul.f32 %v401, 0.6931472
        %v403 = vsub.f32 1.0, %v399
        %v404 = vadd.f32 %v403, 1e-07
        %v405 = vlog2.pop %v404
        %v406 = vmul.f32 %v405, 0.6931472
        %v407 = vsub.f32 %v402, %v406
        %v408 = vld [vmem:[%s316] sm:$0xff]
        %v409 = vld [vmem:[%s316 + $0x8] sm:$0xff]
        %v410 = vld [vmem:[%s316 + $0x10] sm:$0xff]
        %v411 = vld [vmem:[%s316 + $0x18] sm:$0xff]
        %v412 = vld [vmem:[%s316 + $0x20] sm:$0xff]
        %v413 = vld [vmem:[%s316 + $0x28] sm:$0xff]
        %v414 = vld [vmem:[%s316 + $0x30] sm:$0xff]
        %v415 = vld [vmem:[%s316 + $0x38] sm:$0xff]
        %v416 = vld [vmem:[%s316 + $0x40] sm:$0xff]
        %v417 = vld [vmem:[%s316 + $0x48] sm:$0xff]
        %v418 = vld [vmem:[%s316 + $0x50] sm:$0xff]
        %v419 = vld [vmem:[%s316 + $0x58] sm:$0xff]
        %v420 = vld [vmem:[%s316 + $0x60] sm:$0xff]
        %v421 = vld [vmem:[%s316 + $0x68] sm:$0xff]
        %v422 = vld [vmem:[%s316 + $0x70] sm:$0xff]
        %v423 = vld [vmem:[%s316 + $0x78] sm:$0xff]
        %v424 = vadd.f32 %v408, 1e-07
        %v425 = vadd.f32 %v409, 1e-07
        %v426 = vadd.f32 %v410, 1e-07
        %v427 = vadd.f32 %v411, 1e-07
        %v428 = vadd.f32 %v412, 1e-07
        %v429 = vadd.f32 %v413, 1e-07
        %v430 = vadd.f32 %v414, 1e-07
        %v431 = vadd.f32 %v415, 1e-07
        %v432 = vadd.f32 %v416, 1e-07
        %v433 = vadd.f32 %v417, 1e-07
        %v434 = vadd.f32 %v418, 1e-07
        %v435 = vadd.f32 %v419, 1e-07
        %v436 = vadd.f32 %v420, 1e-07
        %v437 = vadd.f32 %v421, 1e-07
        %v438 = vadd.f32 %v422, 1e-07
        %v439 = vadd.f32 %v423, 1e-07
        %v440 = vsub.f32 1.0, %v408
        %v441 = vsub.f32 1.0, %v409
        %v442 = vsub.f32 1.0, %v410
        %v443 = vsub.f32 1.0, %v411
        %v444 = vsub.f32 1.0, %v412
        %v445 = vsub.f32 1.0, %v413
        %v446 = vsub.f32 1.0, %v414
        %v447 = vsub.f32 1.0, %v415
        %v448 = vsub.f32 1.0, %v416
        %v449 = vsub.f32 1.0, %v417
        %v450 = vsub.f32 1.0, %v418
        %v451 = vsub.f32 1.0, %v419
        %v452 = vsub.f32 1.0, %v420
        %v453 = vsub.f32 1.0, %v421
        %v454 = vsub.f32 1.0, %v422
        %v455 = vsub.f32 1.0, %v423
        %v456 = vadd.f32 %v440, 1e-07
        %v457 = vadd.f32 %v441, 1e-07
        %v458 = vadd.f32 %v442, 1e-07
        %v459 = vadd.f32 %v443, 1e-07
        %v460 = vadd.f32 %v444, 1e-07
        %v461 = vadd.f32 %v445, 1e-07
        %v462 = vadd.f32 %v446, 1e-07
        %v463 = vadd.f32 %v447, 1e-07
        %v464 = vadd.f32 %v448, 1e-07
        %v465 = vadd.f32 %v449, 1e-07
        %v466 = vadd.f32 %v450, 1e-07
        %v467 = vadd.f32 %v451, 1e-07
        %v468 = vadd.f32 %v452, 1e-07
        %v469 = vadd.f32 %v453, 1e-07
        %v470 = vadd.f32 %v454, 1e-07
        %v471 = vadd.f32 %v455, 1e-07
        %v472 = vrcp.pop %v456
        %v473 = vmul.f32 %v424, %v472
        %v474 = vrcp.pop %v457
        %v475 = vmul.f32 %v425, %v474
        %v476 = vrcp.pop %v458
        %v477 = vmul.f32 %v426, %v476
        %v478 = vrcp.pop %v459
        %v479 = vmul.f32 %v427, %v478
        %v480 = vrcp.pop %v460
        %v481 = vmul.f32 %v428, %v480
        %v482 = vrcp.pop %v461
        %v483 = vmul.f32 %v429, %v482
        %v484 = vrcp.pop %v462
        %v485 = vmul.f32 %v430, %v484
        %v486 = vrcp.pop %v463
        %v487 = vmul.f32 %v431, %v486
        %v488 = vrcp.pop %v464
        %v489 = vmul.f32 %v432, %v488
        %v490 = vrcp.pop %v465
        %v491 = vmul.f32 %v433, %v490
        %v492 = vrcp.pop %v466
        %v493 = vmul.f32 %v434, %v492
        %v494 = vrcp.pop %v467
        %v495 = vmul.f32 %v435, %v494
        %v496 = vrcp.pop %v468
        %v497 = vmul.f32 %v436, %v496
        %v498 = vrcp.pop %v469
        %v499 = vmul.f32 %v437, %v498
        %v500 = vrcp.pop %v470
        %v501 = vmul.f32 %v438, %v500
        %v502 = vrcp.pop %v471
        %v503 = vmul.f32 %v439, %v502
        %v504 = vlog2.pop %v473
        %v505 = vmul.f32 %v504, 0.6931472
        %v506 = vlog2.pop %v475
        %v507 = vmul.f32 %v506, 0.6931472
        %v508 = vlog2.pop %v477
        %v509 = vmul.f32 %v508, 0.6931472
        %v510 = vlog2.pop %v479
        %v511 = vmul.f32 %v510, 0.6931472
        %v512 = vlog2.pop %v481
        %v513 = vmul.f32 %v512, 0.6931472
        %v514 = vlog2.pop %v483
        %v515 = vmul.f32 %v514, 0.6931472
        %v516 = vlog2.pop %v485
        %v517 = vmul.f32 %v516, 0.6931472
        %v518 = vlog2.pop %v487
        %v519 = vmul.f32 %v518, 0.6931472
        %v520 = vlog2.pop %v489
        %v521 = vmul.f32 %v520, 0.6931472
        %v522 = vlog2.pop %v491
        %v523 = vmul.f32 %v522, 0.6931472
        %v524 = vlog2.pop %v493
        %v525 = vmul.f32 %v524, 0.6931472
        %v526 = vlog2.pop %v495
        %v527 = vmul.f32 %v526, 0.6931472
        %v528 = vlog2.pop %v497
        %v529 = vmul.f32 %v528, 0.6931472
        %v530 = vlog2.pop %v499
        %v531 = vmul.f32 %v530, 0.6931472
        %v532 = vlog2.pop %v501
        %v533 = vmul.f32 %v532, 0.6931472
        %v534 = vlog2.pop %v503
        %v535 = vmul.f32 %v534, 0.6931472
        %v536 = vadd.f32 %v505, %v407
        %v537 = vadd.f32 %v507, %v407
        %v538 = vadd.f32 %v509, %v407
        %v539 = vadd.f32 %v511, %v407
        %v540 = vadd.f32 %v513, %v407
        %v541 = vadd.f32 %v515, %v407
        %v542 = vadd.f32 %v517, %v407
        %v543 = vadd.f32 %v519, %v407
        %v544 = vadd.f32 %v521, %v407
        %v545 = vadd.f32 %v523, %v407
        %v546 = vadd.f32 %v525, %v407
        %v547 = vadd.f32 %v527, %v407
        %v548 = vadd.f32 %v529, %v407
        %v549 = vadd.f32 %v531, %v407
        %v550 = vadd.f32 %v533, %v407
        %v551 = vadd.f32 %v535, %v407
        %v552 = vmul.f32 %v536, 10.0
        %v553 = vmul.f32 %v537, 10.0
        %v554 = vmul.f32 %v538, 10.0
        %v555 = vmul.f32 %v539, 10.0
        %v556 = vmul.f32 %v540, 10.0
        %v557 = vmul.f32 %v541, 10.0
        %v558 = vmul.f32 %v542, 10.0
        %v559 = vmul.f32 %v543, 10.0
        %v560 = vmul.f32 %v544, 10.0
        %v561 = vmul.f32 %v545, 10.0
        %v562 = vmul.f32 %v546, 10.0
        %v563 = vmul.f32 %v547, 10.0
        %v564 = vmul.f32 %v548, 10.0
        %v565 = vmul.f32 %v549, 10.0
        %v566 = vmul.f32 %v550, 10.0
        %v567 = vmul.f32 %v551, 10.0
        %v568 = vxor.u32 %v552, 2147483648
        %v569 = vxor.u32 %v553, 2147483648
        %v570 = vxor.u32 %v554, 2147483648
        %v571 = vxor.u32 %v555, 2147483648
        %v572 = vxor.u32 %v556, 2147483648
        %v573 = vxor.u32 %v557, 2147483648
        %v574 = vxor.u32 %v558, 2147483648
        %v575 = vxor.u32 %v559, 2147483648
        %v576 = vxor.u32 %v560, 2147483648
        %v577 = vxor.u32 %v561, 2147483648
        %v578 = vxor.u32 %v562, 2147483648
        %v579 = vxor.u32 %v563, 2147483648
        %v580 = vxor.u32 %v564, 2147483648
        %v581 = vxor.u32 %v565, 2147483648
        %v582 = vxor.u32 %v566, 2147483648
        %v583 = vxor.u32 %v567, 2147483648
        %v584 = vmul.f32 %v568, 1.442695
        %v585 = vpow.pop %v584
        %v586 = vmul.f32 %v569, 1.442695
        %v587 = vpow.pop %v586
        %v588 = vmul.f32 %v570, 1.442695
        %v589 = vpow.pop %v588
        %v590 = vmul.f32 %v571, 1.442695
        %v591 = vpow.pop %v590
        %v592 = vmul.f32 %v572, 1.442695
        %v593 = vpow.pop %v592
        %v594 = vmul.f32 %v573, 1.442695
        %v595 = vpow.pop %v594
        %v596 = vmul.f32 %v574, 1.442695
        %v597 = vpow.pop %v596
        %v598 = vmul.f32 %v575, 1.442695
        %v599 = vpow.pop %v598
        %v600 = vmul.f32 %v576, 1.442695
        %v601 = vpow.pop %v600
        %v602 = vmul.f32 %v577, 1.442695
        %v603 = vpow.pop %v602
        %v604 = vmul.f32 %v578, 1.442695
        %v605 = vpow.pop %v604
        %v606 = vmul.f32 %v579, 1.442695
        %v607 = vpow.pop %v606
        %v608 = vmul.f32 %v580, 1.442695
        %v609 = vpow.pop %v608
        %v610 = vmul.f32 %v581, 1.442695
        %v611 = vpow.pop %v610
        %v612 = vmul.f32 %v582, 1.442695
        %v613 = vpow.pop %v612
        %v614 = vmul.f32 %v583, 1.442695
        %v615 = vpow.pop %v614
        %v616 = vadd.f32 %v585, 1.0
        %v617 = vadd.f32 %v587, 1.0
        %v618 = vadd.f32 %v589, 1.0
        %v619 = vadd.f32 %v591, 1.0
        %v620 = vadd.f32 %v593, 1.0
        %v621 = vadd.f32 %v595, 1.0
        %v622 = vadd.f32 %v597, 1.0
        %v623 = vadd.f32 %v599, 1.0
        %v624 = vadd.f32 %v601, 1.0
        %v625 = vadd.f32 %v603, 1.0
        %v626 = vadd.f32 %v605, 1.0
        %v627 = vadd.f32 %v607, 1.0
        %v628 = vadd.f32 %v609, 1.0
        %v629 = vadd.f32 %v611, 1.0
        %v630 = vadd.f32 %v613, 1.0
        %v631 = vadd.f32 %v615, 1.0
        %v632 = vrcp.pop %v616
        %v633 = vmul.f32 1.0, %v632
        %v634 = vrcp.pop %v617
        %v635 = vmul.f32 1.0, %v634
        %v636 = vrcp.pop %v618
        %v637 = vmul.f32 1.0, %v636
        %v638 = vrcp.pop %v619
        %v639 = vmul.f32 1.0, %v638
        %v640 = vrcp.pop %v620
        %v641 = vmul.f32 1.0, %v640
        %v642 = vrcp.pop %v621
        %v643 = vmul.f32 1.0, %v642
        %v644 = vrcp.pop %v622
        %v645 = vmul.f32 1.0, %v644
        %v646 = vrcp.pop %v623
        %v647 = vmul.f32 1.0, %v646
        %v648 = vrcp.pop %v624
        %v649 = vmul.f32 1.0, %v648
        %v650 = vrcp.pop %v625
        %v651 = vmul.f32 1.0, %v650
        %v652 = vrcp.pop %v626
        %v653 = vmul.f32 1.0, %v652
        %v654 = vrcp.pop %v627
        %v655 = vmul.f32 1.0, %v654
        %v656 = vrcp.pop %v628
        %v657 = vmul.f32 1.0, %v656
        %v658 = vrcp.pop %v629
        %v659 = vmul.f32 1.0, %v658
        %v660 = vrcp.pop %v630
        %v661 = vmul.f32 1.0, %v660
        %v662 = vrcp.pop %v631
        %v663 = vmul.f32 1.0, %v662
        %v664 = vld [vmem:[%s307] sm:$0xff]
        %v665 = vld [vmem:[%s307 + $0x8] sm:$0xff]
        %v666 = vld [vmem:[%s307 + $0x10] sm:$0xff]
        %v667 = vld [vmem:[%s307 + $0x18] sm:$0xff]
        %v668 = vld [vmem:[%s307 + $0x20] sm:$0xff]
        %v669 = vld [vmem:[%s307 + $0x28] sm:$0xff]
        %v670 = vld [vmem:[%s307 + $0x30] sm:$0xff]
        %v671 = vld [vmem:[%s307 + $0x38] sm:$0xff]
        %v672 = vld [vmem:[%s307 + $0x40] sm:$0xff]
        %v673 = vld [vmem:[%s307 + $0x48] sm:$0xff]
        %v674 = vld [vmem:[%s307 + $0x50] sm:$0xff]
        %v675 = vld [vmem:[%s307 + $0x58] sm:$0xff]
        %v676 = vld [vmem:[%s307 + $0x60] sm:$0xff]
        %v677 = vld [vmem:[%s307 + $0x68] sm:$0xff]
        %v678 = vld [vmem:[%s307 + $0x70] sm:$0xff]
        %v679 = vld [vmem:[%s307 + $0x78] sm:$0xff]
        %v680 = vsub.f32 1.0, %v633
        %v681 = vsub.f32 1.0, %v635
        %v682 = vsub.f32 1.0, %v637
        %v683 = vsub.f32 1.0, %v639
        %v684 = vsub.f32 1.0, %v641
        %v685 = vsub.f32 1.0, %v643
        %v686 = vsub.f32 1.0, %v645
        %v687 = vsub.f32 1.0, %v647
        %v688 = vsub.f32 1.0, %v649
        %v689 = vsub.f32 1.0, %v651
        %v690 = vsub.f32 1.0, %v653
        %v691 = vsub.f32 1.0, %v655
        %v692 = vsub.f32 1.0, %v657
        %v693 = vsub.f32 1.0, %v659
        %v694 = vsub.f32 1.0, %v661
        %v695 = vsub.f32 1.0, %v663
        %v696 = vmul.f32 %v664, %v680
        %v697 = vmul.f32 %v665, %v681
        %v698 = vmul.f32 %v666, %v682
        %v699 = vmul.f32 %v667, %v683
        %v700 = vmul.f32 %v668, %v684
        %v701 = vmul.f32 %v669, %v685
        %v702 = vmul.f32 %v670, %v686
        %v703 = vmul.f32 %v671, %v687
        %v704 = vmul.f32 %v672, %v688
        %v705 = vmul.f32 %v673, %v689
        %v706 = vmul.f32 %v674, %v690
        %v707 = vmul.f32 %v675, %v691
        %v708 = vmul.f32 %v676, %v692
        %v709 = vmul.f32 %v677, %v693
        %v710 = vmul.f32 %v678, %v694
        %v711 = vmul.f32 %v679, %v695
        %v712 = vld [vmem:[#allocation2] sm:$0xff]
        %v713 = vld [vmem:[#allocation2 + $0x8] sm:$0xff]
        %v714 = vld [vmem:[#allocation2 + $0x10] sm:$0xff]
        %v715 = vld [vmem:[#allocation2 + $0x18] sm:$0xff]
        %v716 = vld [vmem:[#allocation2 + $0x20] sm:$0xff]
        %v717 = vld [vmem:[#allocation2 + $0x28] sm:$0xff]
        %v718 = vld [vmem:[#allocation2 + $0x30] sm:$0xff]
        %v719 = vld [vmem:[#allocation2 + $0x38] sm:$0xff]
        %v720 = vld [vmem:[#allocation2 + $0x40] sm:$0xff]
        %v721 = vld [vmem:[#allocation2 + $0x48] sm:$0xff]
        %v722 = vld [vmem:[#allocation2 + $0x50] sm:$0xff]
        %v723 = vld [vmem:[#allocation2 + $0x58] sm:$0xff]
        %v724 = vld [vmem:[#allocation2 + $0x60] sm:$0xff]
        %v725 = vld [vmem:[#allocation2 + $0x68] sm:$0xff]
        %v726 = vld [vmem:[#allocation2 + $0x70] sm:$0xff]
        %v727 = vld [vmem:[#allocation2 + $0x78] sm:$0xff]
        %v728 = vld [vmem:[%s325] sm:$0xff]
        %v729 = vld [vmem:[%s325 + $0x8] sm:$0xff]
        %v730 = vld [vmem:[%s325 + $0x10] sm:$0xff]
        %v731 = vld [vmem:[%s325 + $0x18] sm:$0xff]
        %v732 = vld [vmem:[%s325 + $0x20] sm:$0xff]
        %v733 = vld [vmem:[%s325 + $0x28] sm:$0xff]
        %v734 = vld [vmem:[%s325 + $0x30] sm:$0xff]
        %v735 = vld [vmem:[%s325 + $0x38] sm:$0xff]
        %v736 = vld [vmem:[%s325 + $0x40] sm:$0xff]
        %v737 = vld [vmem:[%s325 + $0x48] sm:$0xff]
        %v738 = vld [vmem:[%s325 + $0x50] sm:$0xff]
        %v739 = vld [vmem:[%s325 + $0x58] sm:$0xff]
        %v740 = vld [vmem:[%s325 + $0x60] sm:$0xff]
        %v741 = vld [vmem:[%s325 + $0x68] sm:$0xff]
        %v742 = vld [vmem:[%s325 + $0x70] sm:$0xff]
        %v743 = vld [vmem:[%s325 + $0x78] sm:$0xff]
        %744 = vmatprep.subr.mxu0 0.0
        %745 = vmatpush1.msra.mxu0 %v743
        %746 = vmatprep.subr.mxu0 0.0
        %747 = vmatpush1.msra.mxu0 %v742
        %748 = vmatprep.subr.mxu0 0.0
        %749 = vmatpush1.msra.mxu0 %v741
        %750 = vmatprep.subr.mxu0 0.0
        %751 = vmatpush1.msra.mxu0 %v740
        %752 = vmatprep.subr.mxu0 0.0
        %753 = vmatpush1.msra.mxu0 %v739
        %754 = vmatprep.subr.mxu0 0.0
        %755 = vmatpush1.msra.mxu0 %v738
        %756 = vmatprep.subr.mxu0 0.0
        %757 = vmatpush1.msra.mxu0 %v737
        %758 = vmatprep.subr.mxu0 0.0
        %759 = vmatpush1.msra.mxu0 %v736
        %760 = vmatprep.subr.mxu0 0.0
        %761 = vmatpush1.msra.mxu0 %v735
        %762 = vmatprep.subr.mxu0 0.0
        %763 = vmatpush1.msra.mxu0 %v734
        %764 = vmatprep.subr.mxu0 0.0
        %765 = vmatpush1.msra.mxu0 %v733
        %766 = vmatprep.subr.mxu0 0.0
        %767 = vmatpush1.msra.mxu0 %v732
        %768 = vmatprep.subr.mxu0 0.0
        %769 = vmatpush1.msra.mxu0 %v731
        %770 = vmatprep.subr.mxu0 0.0
        %771 = vmatpush1.msra.mxu0 %v730
        %772 = vmatprep.subr.mxu0 0.0
        %773 = vmatpush1.msra.mxu0 %v729
        %774 = vmatprep.subr.mxu0 0.0
        %775 = vmatpush1.msra.mxu0 %v728
        %776 = vmatprep.subr.mxu0 0.0
        %777 = vmatpush2.msra.mxu0 0.0
        %778 = vmatprep.subr.mxu0 0.0
        %779 = vmatpush2.msra.mxu0 0.0
        %780 = vmatprep.subr.mxu0 0.0
        %781 = vmatpush2.msra.mxu0 0.0
        %782 = vmatprep.subr.mxu0 0.0
        %783 = vmatpush2.msra.mxu0 0.0
        %784 = vmatprep.subr.mxu0 0.0
        %785 = vmatpush2.msra.mxu0 0.0
        %786 = vmatprep.subr.mxu0 0.0
        %787 = vmatpush2.msra.mxu0 0.0
        %788 = vmatprep.subr.mxu0 0.0
        %789 = vmatpush2.msra.mxu0 0.0
        %790 = vmatprep.subr.mxu0 0.0
        %791 = vmatpush2.msra.mxu0 0.0
        %792 = vmatprep.subr.mxu0 0.0
        %793 = vmatpush2.msra.mxu0 0.0
        %794 = vmatprep.subr.mxu0 0.0
        %795 = vmatpush2.msra.mxu0 0.0
        %796 = vmatprep.subr.mxu0 0.0
        %797 = vmatpush2.msra.mxu0 0.0
        %798 = vmatprep.subr.mxu0 0.0
        %799 = vmatpush2.msra.mxu0 0.0
        %800 = vmatprep.subr.mxu0 0.0
        %801 = vmatpush2.msra.mxu0 0.0
        %802 = vmatprep.subr.mxu0 0.0
        %803 = vmatpush2.msra.mxu0 0.0
        %804 = vmatprep.subr.mxu0 0.0
        %805 = vmatpush2.msra.mxu0 0.0
        %806 = vmatprep.subr.mxu0 0.0
        %807 = vmatpush2.msra.mxu0 0.0
        %808 = vmatprep.mubr.f32.mxu0 0.0
        %809 = vmatmul.mubr.f32.gmra.mxu0 %v696
        %v810 = vpop.f32.mrf.mxu0
        %v811 = vadd.f32 0.0, %v810
        %v812 = vpop.f32.mrf.mxu0
        %813 = vmatprep.mubr.f32.mxu0 0.0
        %814 = vmatmul.mubr.f32.gmra.mxu0 %v697
        %v815 = vpop.f32.mrf.mxu0
        %v816 = vadd.f32 0.0, %v815
        %v817 = vpop.f32.mrf.mxu0
        %818 = vmatprep.mubr.f32.mxu0 0.0
        %819 = vmatmul.mubr.f32.gmra.mxu0 %v698
        %v820 = vpop.f32.mrf.mxu0
        %v821 = vadd.f32 0.0, %v820
        %v822 = vpop.f32.mrf.mxu0
        %823 = vmatprep.mubr.f32.mxu0 0.0
        %824 = vmatmul.mubr.f32.gmra.mxu0 %v699
        %v825 = vpop.f32.mrf.mxu0
        %v826 = vadd.f32 0.0, %v825
        %v827 = vpop.f32.mrf.mxu0
        %828 = vmatprep.mubr.f32.mxu0 0.0
        %829 = vmatmul.mubr.f32.gmra.mxu0 %v700
        %v830 = vpop.f32.mrf.mxu0
        %v831 = vadd.f32 0.0, %v830
        %v832 = vpop.f32.mrf.mxu0
        %833 = vmatprep.mubr.f32.mxu0 0.0
        %834 = vmatmul.mubr.f32.gmra.mxu0 %v701
        %v835 = vpop.f32.mrf.mxu0
        %v836 = vadd.f32 0.0, %v835
        %v837 = vpop.f32.mrf.mxu0
        %838 = vmatprep.mubr.f32.mxu0 0.0
        %839 = vmatmul.mubr.f32.gmra.mxu0 %v702
        %v840 = vpop.f32.mrf.mxu0
        %v841 = vadd.f32 0.0, %v840
        %v842 = vpop.f32.mrf.mxu0
        %843 = vmatprep.mubr.f32.mxu0 0.0
        %844 = vmatmul.mubr.f32.gmra.mxu0 %v703
        %v845 = vpop.f32.mrf.mxu0
        %v846 = vadd.f32 0.0, %v845
        %v847 = vpop.f32.mrf.mxu0
        %848 = vmatprep.mubr.f32.mxu0 0.0
        %849 = vmatmul.mubr.f32.gmra.mxu0 %v704
        %v850 = vpop.f32.mrf.mxu0
        %v851 = vadd.f32 0.0, %v850
        %v852 = vpop.f32.mrf.mxu0
        %853 = vmatprep.mubr.f32.mxu0 0.0
        %854 = vmatmul.mubr.f32.gmra.mxu0 %v705
        %v855 = vpop.f32.mrf.mxu0
        %v856 = vadd.f32 0.0, %v855
        %v857 = vpop.f32.mrf.mxu0
        %858 = vmatprep.mubr.f32.mxu0 0.0
        %859 = vmatmul.mubr.f32.gmra.mxu0 %v706
        %v860 = vpop.f32.mrf.mxu0
        %v861 = vadd.f32 0.0, %v860
        %v862 = vpop.f32.mrf.mxu0
        %863 = vmatprep.mubr.f32.mxu0 0.0
        %864 = vmatmul.mubr.f32.gmra.mxu0 %v707
        %v865 = vpop.f32.mrf.mxu0
        %v866 = vadd.f32 0.0, %v865
        %v867 = vpop.f32.mrf.mxu0
        %868 = vmatprep.mubr.f32.mxu0 0.0
        %869 = vmatmul.mubr.f32.gmra.mxu0 %v708
        %v870 = vpop.f32.mrf.mxu0
        %v871 = vadd.f32 0.0, %v870
        %v872 = vpop.f32.mrf.mxu0
        %873 = vmatprep.mubr.f32.mxu0 0.0
        %874 = vmatmul.mubr.f32.gmra.mxu0 %v709
        %v875 = vpop.f32.mrf.mxu0
        %v876 = vadd.f32 0.0, %v875
        %v877 = vpop.f32.mrf.mxu0
        %878 = vmatprep.mubr.f32.mxu0 0.0
        %879 = vmatmul.mubr.f32.gmra.mxu0 %v710
        %v880 = vpop.f32.mrf.mxu0
        %v881 = vadd.f32 0.0, %v880
        %v882 = vpop.f32.mrf.mxu0
        %883 = vmatprep.mubr.f32.mxu0 0.0
        %884 = vmatmul.mubr.f32.gmra.mxu0 %v711
        %v885 = vpop.f32.mrf.mxu0
        %v886 = vadd.f32 0.0, %v885
        %v887 = vpop.f32.mrf.mxu0
        %888 = vdwg.mxu0
        %v889 = vadd.f32 %v712, %v811
        %v890 = vadd.f32 %v713, %v816
        %v891 = vadd.f32 %v714, %v821
        %v892 = vadd.f32 %v715, %v826
        %v893 = vadd.f32 %v716, %v831
        %v894 = vadd.f32 %v717, %v836
        %v895 = vadd.f32 %v718, %v841
        %v896 = vadd.f32 %v719, %v846
        %v897 = vadd.f32 %v720, %v851
        %v898 = vadd.f32 %v721, %v856
        %v899 = vadd.f32 %v722, %v861
        %v900 = vadd.f32 %v723, %v866
        %v901 = vadd.f32 %v724, %v871
        %v902 = vadd.f32 %v725, %v876
        %v903 = vadd.f32 %v726, %v881
        %v904 = vadd.f32 %v727, %v886
        %905 = vst [vmem:[#allocation2] sm:$0xff] %v889
        %906 = vst [vmem:[#allocation2 + $0x8] sm:$0xff] %v890
        %907 = vst [vmem:[#allocation2 + $0x10] sm:$0xff] %v891
        %908 = vst [vmem:[#allocation2 + $0x18] sm:$0xff] %v892
        %909 = vst [vmem:[#allocation2 + $0x20] sm:$0xff] %v893
        %910 = vst [vmem:[#allocation2 + $0x28] sm:$0xff] %v894
        %911 = vst [vmem:[#allocation2 + $0x30] sm:$0xff] %v895
        %912 = vst [vmem:[#allocation2 + $0x38] sm:$0xff] %v896
        %913 = vst [vmem:[#allocation2 + $0x40] sm:$0xff] %v897
        %914 = vst [vmem:[#allocation2 + $0x48] sm:$0xff] %v898
        %915 = vst [vmem:[#allocation2 + $0x50] sm:$0xff] %v899
        %916 = vst [vmem:[#allocation2 + $0x58] sm:$0xff] %v900
        %917 = vst [vmem:[#allocation2 + $0x60] sm:$0xff] %v901
        %918 = vst [vmem:[#allocation2 + $0x68] sm:$0xff] %v902
        %919 = vst [vmem:[#allocation2 + $0x70] sm:$0xff] %v903
        %920 = vst [vmem:[#allocation2 + $0x78] sm:$0xff] %v904
        %p921 = scmp.eq.s32.totalorder %s33, 2
        // Predicated region
        $region57: #{tpu_custom_call.1} parent=39 // pred_check
          %p922 = pneg %p921
        $region58: #{tpu_custom_call.1} parent=39 // pred_check_branch
          %924 = sbr.rel (%p922) target = $region60
        $region59: #{tpu_custom_call.1} parent=39 // pred_region
          %v925 = vrcp.pop %v403
          %v926 = vmul.f32 1.0, %v925
          %v927 = vld [vmem:[#allocation2] sm:$0xff]
          %v928 = vld [vmem:[#allocation2 + $0x8] sm:$0xff]
          %v929 = vld [vmem:[#allocation2 + $0x10] sm:$0xff]
          %v930 = vld [vmem:[#allocation2 + $0x18] sm:$0xff]
          %v931 = vld [vmem:[#allocation2 + $0x20] sm:$0xff]
          %v932 = vld [vmem:[#allocation2 + $0x28] sm:$0xff]
          %v933 = vld [vmem:[#allocation2 + $0x30] sm:$0xff]
          %v934 = vld [vmem:[#allocation2 + $0x38] sm:$0xff]
          %v935 = vld [vmem:[#allocation2 + $0x40] sm:$0xff]
          %v936 = vld [vmem:[#allocation2 + $0x48] sm:$0xff]
          %v937 = vld [vmem:[#allocation2 + $0x50] sm:$0xff]
          %v938 = vld [vmem:[#allocation2 + $0x58] sm:$0xff]
          %v939 = vld [vmem:[#allocation2 + $0x60] sm:$0xff]
          %v940 = vld [vmem:[#allocation2 + $0x68] sm:$0xff]
          %v941 = vld [vmem:[#allocation2 + $0x70] sm:$0xff]
          %v942 = vld [vmem:[#allocation2 + $0x78] sm:$0xff]
          %v943 = vmul.f32 %v927, %v926
          %v944 = vmul.f32 %v928, %v926
          %v945 = vmul.f32 %v929, %v926
          %v946 = vmul.f32 %v930, %v926
          %v947 = vmul.f32 %v931, %v926
          %v948 = vmul.f32 %v932, %v926
          %v949 = vmul.f32 %v933, %v926
          %v950 = vmul.f32 %v934, %v926
          %v951 = vmul.f32 %v935, %v926
          %v952 = vmul.f32 %v936, %v926
          %v953 = vmul.f32 %v937, %v926
          %v954 = vmul.f32 %v938, %v926
          %v955 = vmul.f32 %v939, %v926
          %v956 = vmul.f32 %v940, %v926
          %v957 = vmul.f32 %v941, %v926
          %v958 = vmul.f32 %v942, %v926
          %v959 = vld [vmem:[%s370] sm:$0x1]
          %v961 = vlaneseq
          %v962 = vshrl.u32 %v961, 7
          %v963 = vsub.s32 0, %v962
          %v964 = vrot.slane %v959, %v963
          %v966 = vadd.f32 %v943, %v964
          %v967 = vadd.f32 %v944, %v964
          %v968 = vadd.f32 %v945, %v964
          %v969 = vadd.f32 %v946, %v964
          %v970 = vadd.f32 %v947, %v964
          %v971 = vadd.f32 %v948, %v964
          %v972 = vadd.f32 %v949, %v964
          %v973 = vadd.f32 %v950, %v964
          %v974 = vadd.f32 %v951, %v964
          %v975 = vadd.f32 %v952, %v964
          %v976 = vadd.f32 %v953, %v964
          %v977 = vadd.f32 %v954, %v964
          %v978 = vadd.f32 %v955, %v964
          %v979 = vadd.f32 %v956, %v964
          %v980 = vadd.f32 %v957, %v964
          %v981 = vadd.f32 %v958, %v964
          %982 = vst [vmem:[%s364] sm:$0xff] %v966
          %983 = vst [vmem:[%s364 + $0x8] sm:$0xff] %v967
          %984 = vst [vmem:[%s364 + $0x10] sm:$0xff] %v968
          %985 = vst [vmem:[%s364 + $0x18] sm:$0xff] %v969
          %986 = vst [vmem:[%s364 + $0x20] sm:$0xff] %v970
          %987 = vst [vmem:[%s364 + $0x28] sm:$0xff] %v971
          %988 = vst [vmem:[%s364 + $0x30] sm:$0xff] %v972
          %989 = vst [vmem:[%s364 + $0x38] sm:$0xff] %v973
          %990 = vst [vmem:[%s364 + $0x40] sm:$0xff] %v974
          %991 = vst [vmem:[%s364 + $0x48] sm:$0xff] %v975
          %992 = vst [vmem:[%s364 + $0x50] sm:$0xff] %v976
          %993 = vst [vmem:[%s364 + $0x58] sm:$0xff] %v977
          %994 = vst [vmem:[%s364 + $0x60] sm:$0xff] %v978
          %995 = vst [vmem:[%s364 + $0x68] sm:$0xff] %v979
          %996 = vst [vmem:[%s364 + $0x70] sm:$0xff] %v980
          %997 = vst [vmem:[%s364 + $0x78] sm:$0xff] %v981
        $region60: #{tpu_custom_call.1} parent=39 // pred_fallthru
          _
        %s998 = sand.u32 %s186, 1
        %s999 = scalar_lea.sflag [#allocation6], %s998
        %s1000 = sand.u32 %s186, 1
        %s1001 = smul.addr %s1000, 128
        %s1002 = scalar_lea.vmem [#allocation10], %s1001
        // Predicated region
        $region61: #{tpu_custom_call.1} parent=39 // pred_check
          %p1003 = pneg %p196
        $region62: #{tpu_custom_call.1} parent=39 // pred_check_branch
          %1005 = sbr.rel (%p1003) target = $region64
        $region63: #{tpu_custom_call.1} parent=39 // pred_region
          %s1006 = smul.u32 16, %s31
          %s1008 = ssub.s32 2048, 2048
          %1009 = vsyncadd %s999, %s1008
          %s1010 = smul.addr %s1006, 2
          %s1011 = sadd.s32 %s32, %s1010
          %s1012 = smul.addr %s1011, 128
          %s1013 = scalar_lea.hbm %s5, %s1012
          %s1014 = sshll.u32 %s1002, 4
          %s1015 = int_to_ptr.vmem [resolvable:$true] %s1014
          %1020 = dma.vmem_to_hbm [thread:$0]  %s1015, 2048, %s1013, %s999, 128, 256, 8
        $region64: #{tpu_custom_call.1} parent=39 // pred_fallthru
          _
      $region40: #{tpu_custom_call.1} parent=5 // pred_fallthru
        _
      %p1021 = scmp.le.s32.totalorder 2, %s21
      // Predicated region
      $region65: #{tpu_custom_call.1} parent=5 // pred_check
        %p1022 = pneg %p1021
      $region66: #{tpu_custom_call.1} parent=5 // pred_check_branch
        %1024 = sbr.rel (%p1022) target = $region68
      $region67: #{tpu_custom_call.1} parent=5 // pred_region
        %s1025 = ssub.s32 %s21, 2
        // Predicated region
        $region69: #{tpu_custom_call.1} parent=67 // pred_check
          %p1026 = pneg %p202
        $region70: #{tpu_custom_call.1} parent=67 // pred_check_branch
          %1028 = sbr.rel (%p1026) target = $region72
        $region71: #{tpu_custom_call.1} parent=67 // pred_region
          %s1029 = sand.u32 %s187, 1
          %s1030 = scalar_lea.sflag [#allocation6], %s1029
          %s1031 = sand.u32 %s187, 1
          %s1032 = smul.addr %s1031, 128
          %s1033 = scalar_lea.vmem [#allocation10], %s1032
          %1034 = dma.done %s1030, 2048
        $region72: #{tpu_custom_call.1} parent=67 // pred_fallthru
          _
      $region68: #{tpu_custom_call.1} parent=5 // pred_fallthru
        _
    $region6: #{tpu_custom_call.1} parent=1 // loop_footer
      %s25 = sadd.s32 1, %s21
    $region7: #{tpu_custom_call.1} parent=1 // loop_footer_branch
      %20 = sbr.rel target = $region3
    $region8: #{tpu_custom_call.1} parent=1 // loop_exit
      _
    %1035 = vsyncpa [#allocation5], 1
    %s1036 = scalar_lea.sflag [#allocation5], 1
    %1037 = vsyncpa %s1036, 1
    %1038 = vsyncpa [#allocation8], 1
    %s1039 = scalar_lea.sflag [#allocation8], 1
    %1040 = vsyncpa %s1039, 1
    %1041 = vsyncpa [#allocation6], 1
    %s1042 = scalar_lea.sflag [#allocation6], 1
    %1043 = vsyncpa %s1042, 1

</llo_original>
